<compile_context>
chip_gen: v7x
topology: tpu7x:2x2x1
jax: 0.10.0
libtpu: 0.0.40
codegen_flags: <defaults>
</compile_context>

<pallas_src>
import jax
import jax.numpy as jnp
from jax import lax
from jax.experimental import pallas as pl
from jax.experimental.pallas import tpu as pltpu

DEFAULT_TOKENS_PER_TILE = 1024  # rows of output per grid step (multiple of 8)


def _embed_gather_kernel(ids_ref, wte_hbm, out_ref, copy_sem):
    """Gather embedding rows from HBM into one lane-dense output tile.

    ids_ref : SMEM (N_pad,) int32 -- all token ids (scalar-prefetched)
    wte_hbm : ANY  (V, H)         -- embedding table, stays in HBM (no auto-DMA)
    out_ref : VMEM (T, H)         -- output tile for this grid step
    copy_sem: DMA semaphore shared by every row copy of this step
    """
    tile = pl.program_id(0)
    T, _ = out_ref.shape
    V = wte_hbm.shape[0]
    base = tile * T

    def row_copy(t, token):
        # One (1, H) row: HBM -> current VMEM output tile, row t.
        return pltpu.make_async_copy(
            wte_hbm.at[pl.ds(token, 1), :],
            out_ref.at[pl.ds(t, 1), :],
            copy_sem,
        )

    def issue(t, carry):
        raw = ids_ref[base + t]
        # Clamp instead of faulting: an out-of-range id would otherwise be an
        # unchecked HBM DMA (PyTorch nn.Embedding would raise on such input).
        token = jnp.minimum(jnp.maximum(raw, 0), V - 1)
        row_copy(t, token).start()
        return carry

    # Issue all T row copies (they overlap each other and prior-step writeback).
    lax.fori_loop(0, T, issue, 0, unroll=False)

    def drain(t, carry):
        # Any descriptor with the same (1, H) transfer size works for the wait;
        # T waits on the shared semaphore == all T copies completed.
        row_copy(0, 0).wait()
        return carry

    lax.fori_loop(0, T, drain, 0, unroll=False)


def gpt_embeddings_forward(input_ids, wte, *, tokens_per_tile=DEFAULT_TOKENS_PER_TILE):
    """Equivalent of GPTEmbeddings.forward: wte(input_ids.view(-1, S)) -> (-1, S, H)."""
    seq_len = input_ids.shape[-1]
    V, H = wte.shape
    itemsize = jnp.dtype(wte.dtype).itemsize

    ids_flat = input_ids.reshape(-1).astype(jnp.int32)
    N = ids_flat.shape[0]

    # Tile size: multiple of 8 (sublane), never larger than needed.
    T = int(max(8, min(int(tokens_per_tile), -(-N // 8) * 8)))
    num_tiles = -(-N // T)  # ceil-div
    N_pad = num_tiles * T
    if N_pad != N:
        # Pad with id 0 (always a valid row); padded rows are sliced off below.
        # TODO(synk): a pl.when-guarded tail would avoid the pad + slice copies.
        ids_flat = jnp.pad(ids_flat, (0, N_pad - N))

    # Advisory hint: this op is memory-bound (ids read + rows gathered + rows written).
    cost = pl.CostEstimate(
        flops=0,
        transcendentals=0,
        bytes_accessed=int(N_pad * 4 + 2 * N_pad * H * itemsize),
    )

    out_flat = pl.pallas_call(
        _embed_gather_kernel,
        out_shape=jax.ShapeDtypeStruct((N_pad, H), wte.dtype),
        grid_spec=pltpu.PrefetchScalarGridSpec(
            num_scalar_prefetch=1,          # ids -> SMEM before the grid runs
            grid=(num_tiles,),
            in_specs=[
                # Embedding table stays in HBM; rows are DMA'd manually per tile.
                pl.BlockSpec(memory_space=pl.ANY),
            ],
            out_specs=pl.BlockSpec((T, H), lambda i, ids: (i, 0)),
            scratch_shapes=[pltpu.SemaphoreType.DMA],
        ),
        compiler_params=pltpu.CompilerParams(
            # Disjoint output tiles; TODO(synk): pltpu.CORE_PARALLEL on v7x.
            dimension_semantics=("parallel",),
        ),
        cost_estimate=cost,
    )(ids_flat, wte)

    if N_pad != N:
        out_flat = out_flat[:N]
    # Matches torch: input viewed as (-1, S), embedded -> (-1, S, H)
    return out_flat.reshape((-1, seq_len, H))


if __name__ == "__main__":
    # Small synthetic config (config.vocab_size, config.hidden_size).  tokens_per_tile
    # is lowered to 64 so the test exercises multiple grid tiles AND the ragged-tail
    # padding path (N = 300 -> padded to 320, 5 tiles).
    vocab_size = 512
    hidden_size = 128
    batch, seq = 3, 100

    key = jax.random.PRNGKey(0)
    k_wte, k_ids = jax.random.split(key)

    # Deterministic parameter init (nn.Embedding default: N(0, 1))
    wte = jax.random.normal(k_wte, (vocab_size, hidden_size), dtype=jnp.float32)
    input_ids = jax.random.randint(k_ids, (batch, seq), 0, vocab_size, dtype=jnp.int32)

    hidden_states = jax.block_until_ready(
        gpt_embeddings_forward(input_ids, wte, tokens_per_tile=64)
    )

    # Reference check (plain JAX gather) — exact row copies, so exact equality expected.
    ref = jnp.take(wte, input_ids.reshape(-1), axis=0).reshape(batch, seq, hidden_size)
    assert hidden_states.shape == (batch, seq, hidden_size)
    assert jnp.allclose(hidden_states, ref, rtol=0.0, atol=0.0), (
        "mismatch vs reference embedding lookup"
    )

    print("KERNEL_OK")
</pallas_src>

<mosaic_0001>
module attributes {stable_mosaic.version = 11 : i64} {
  func.func @_embed_gather_kernel(%arg0: i32, %arg1: memref<320xi32, #tpu.memory_space<smem>>, %arg2: memref<512x128xf32, #tpu.memory_space<any>>, %arg3: memref<64x128xf32, #tpu.memory_space<vmem>>, %arg4: memref<!tpu.dma_semaphore, #tpu.memory_space<semaphore_mem>>) attributes {dimension_semantics = [#tpu.dimension_semantics<parallel>], iteration_bounds = array<i64: 5>, scalar_prefetch = 1 : i64, scratch_operands = 1 : i64, tpu.core_type = #tpu.core_type<tc>, window_params = [{}, {transform_indices = @transform_1, window_bounds = array<i64: 64, 128>}]} {
    %c64_i32 = arith.constant 64 : i32
    %0 = arith.muli %arg0, %c64_i32 : i32
    %c0_i32 = arith.constant 0 : i32
    %c64_i32_0 = arith.constant 64 : i32
    %1 = arith.addi %c0_i32, %c64_i32_0 : i32
    %c1_i32 = arith.constant 1 : i32
    scf.for %arg5 = %c0_i32 to %1 step %c1_i32  : i32 {
      %3 = arith.addi %0, %arg5 : i32
      %4 = arith.index_cast %3 : i32 to index
      %5 = memref.load %arg1[%4] : memref<320xi32, #tpu.memory_space<smem>>
      %c0_i32_5 = arith.constant 0 : i32
      %6 = arith.maxsi %5, %c0_i32_5 : i32
      %c511_i32 = arith.constant 511 : i32
      %7 = arith.minsi %6, %c511_i32 : i32
      %c0_i32_6 = arith.constant 0 : i32
      %8 = tpu.memref_slice %arg2[%7, %c0_i32_6] : memref<512x128xf32, #tpu.memory_space<any>> -> memref<1x128xf32, #tpu.memory_space<any>>
      %c0_i32_7 = arith.constant 0 : i32
      %9 = tpu.memref_slice %arg3[%arg5, %c0_i32_7] : memref<64x128xf32, #tpu.memory_space<vmem>> -> memref<1x128xf32, #tpu.memory_space<vmem>>
      tpu.enqueue_dma source(%8 : memref<1x128xf32, #tpu.memory_space<any>>) target(%9 : memref<1x128xf32, #tpu.memory_space<vmem>>) target_semaphore(%arg4 : memref<!tpu.dma_semaphore, #tpu.memory_space<semaphore_mem>>)
    }
    %c64_i32_1 = arith.constant 64 : i32
    %c0_i32_2 = arith.constant 0 : i32
    %c64_i32_3 = arith.constant 64 : i32
    %2 = arith.addi %c0_i32_2, %c64_i32_3 : i32
    %c1_i32_4 = arith.constant 1 : i32
    scf.for %arg5 = %c0_i32_2 to %2 step %c1_i32_4  : i32 {
      %c0_i32_5 = arith.constant 0 : i32
      %c0_i32_6 = arith.constant 0 : i32
      %3 = tpu.memref_slice %arg2[%c0_i32_5, %c0_i32_6] : memref<512x128xf32, #tpu.memory_space<any>> -> memref<1x128xf32, #tpu.memory_space<any>>
      %c0_i32_7 = arith.constant 0 : i32
      %c0_i32_8 = arith.constant 0 : i32
      %4 = tpu.memref_slice %arg3[%c0_i32_7, %c0_i32_8] : memref<64x128xf32, #tpu.memory_space<vmem>> -> memref<1x128xf32, #tpu.memory_space<vmem>>
      tpu.wait_dma2 semaphore(%arg4 : memref<!tpu.dma_semaphore, #tpu.memory_space<semaphore_mem>>) src(%3 : memref<1x128xf32, #tpu.memory_space<any>>) dst(%4 : memref<1x128xf32, #tpu.memory_space<vmem>>)
    }
    return
  }
  func.func @transform_1(%arg0: i32, %arg1: memref<320xi32, #tpu.memory_space<smem>>) -> (i32, i32) {
    %c0_i32 = arith.constant 0 : i32
    %c0_i32_0 = arith.constant 0 : i32
    return %arg0, %c0_i32 : i32, i32
  }
}

</mosaic_0001>

<llo_original>
// kernel: tpu_custom_call.1
$region0: #{tpu_custom_call.1}
  #allocation0 [shape = 'u32[]', space=smem, size = 0x4, offset = 0x4, fixed_abs, tag = 'smem constant byte address 0x4 - core index']
  #allocation1 [shape = 'u32[144,128]{1,0:T(1,128)}', space=vmem, size = 0x12000, scoped, tag = 'internal scratch']
  #allocation2 [shape = 's32[1]{0}', space=sflag, size = 0x4, scoped, tag = 'scratch operand']
  #allocation3 [shape = 's32[1]{0}', space=sflag, size = 0x4, scoped, tag = 'scoped memory for tpu_custom_call.1']
  #allocation4 [shape = 'u8[1536]{0}', space=smem, size = 0x600, scoped, tag = 'prefetched SMEM operand 0']
  #allocation7 [shape = 's32[]', space=sflag, size = 0x4, offset = 0, fixed_abs, tag = 'sflag constant byte address 0x0 - dummy sync flag']
  #allocation8 [shape = 's32[]', space=sflag, size = 0x4, offset = 0, fixed_abs, tag = 'sflag constant byte address 0x0 - dummy sync flag']
  #allocation9 [shape = 'u32[]', space=smem, size = 0x4, offset = 0x44, fixed_abs, tag = 'smem constant byte address 0x44 - assertion arg 0']
  #allocation10 [shape = 'u32[]', space=smem, size = 0x4, offset = 0x48, fixed_abs, tag = 'smem constant byte address 0x48 - assertion arg 1']
  %s0 = inlined_call_operand.hbm [shape: s32[320], index: 0, kind: input, shape index: {}]
  %s1 = inlined_call_operand.hbm [shape: f32[512,128], index: 1, kind: input, shape index: {}]
  %s2 = inlined_call_operand.hbm [shape: f32[320,128], index: 2, kind: output, shape index: {}]
  %s3 = sld [smem:[#allocation0]]
  $region43: #{tpu_custom_call.1} parent=0
    _
  %s5 = ssub.s32 1, %s3
  %s6 = scalar_select 0, %s5, %s3
  %8 = dma.hbm_to_smem %s0, 48, [#allocation4], [#allocation3]
  %9 = dma.done [#allocation3], 48
  %10 = sfence
  $region1: #{tpu_custom_call.1} parent=0
    #allocation5 [shape = 'u8[65536]{0}', space=vmem, size = 0x10000, scoped, tag = 'output window, operand 0']
    #allocation6 [shape = 's32[2]{0}', space=sflag, size = 0x8, scoped, tag = 'scoped memory for tpu_custom_call.1']
    %11 = vsyncpa [#allocation6], 0
    %s12 = scalar_lea.sflag [#allocation6], 1
    %13 = vsyncpa %s12, 0
    loop: start=0, step=1, limit=6
    $region2: #{tpu_custom_call.1} parent=1 // loop_pre_header
      _
    $region3: #{tpu_custom_call.1} parent=1 // loop_header
      %s15 = sphi 0, %s19
      %p16 = scmp.ge.s32.totalorder %s15, 6
      %s24 = sphi 0, %s26
      %s27 = sphi 0, %s24
      %s37 = sphi 0, %s27
    $region4: #{tpu_custom_call.1} parent=1 // loop_header_branch
      %18 = sbr.rel (%p16) target = $region8
    $region5: #{tpu_custom_call.1} parent=1 // loop_body
      %s20 = ssub.s32 %s15, 1
      %s21 = sadd.s32 %s15, 1
      %s22 = ssub.s32 %s15, %s21
      %p23 = scmp.eq.s32.totalorder %s22, 0
      %s25 = sadd.s32 %s24, 1
      %s26 = scalar_select %p23, %s24, %s25
      %p28 = pneg %p23
      %p29 = scmp.eq.s32.totalorder %s15, 4
      %p30 = por %p28, %p29
      %p31 = scmp.ne.s32.totalorder %s24, %s27
      %p32 = scmp.eq.s32.totalorder %s15, 0
      %p33 = por %p31, %p32
      %p34 = scmp.ne.s32.totalorder %s24, %s27
      %p35 = scmp.eq.s32.totalorder %s20, 4
      %p36 = por %p34, %p35
      %p38 = scmp.ne.s32.totalorder %s27, %s37
      %p39 = scmp.eq.s32.totalorder %s20, 0
      %p40 = por %p38, %p39
      %p41 = scmp.lt.s32.totalorder %s15, 5
      // Predicated region
      $region9: #{tpu_custom_call.1} parent=5 // pred_check
        %p42 = pneg %p41
      $region10: #{tpu_custom_call.1} parent=5 // pred_check_branch
        %44 = sbr.rel (%p42) target = $region12
      $region11: #{tpu_custom_call.1} parent=5 // pred_region
        %p45 = pneg %p33
        %p46 = pneg %p30
        %s47 = sand.u32 %s24, 1
        %s48 = scalar_lea.sflag [#allocation6], %s47
        %s49 = sand.u32 %s24, 1
        %s50 = smul.addr %s49, 64
        %s51 = scalar_lea.vmem [#allocation5], %s50
        %s52 = smul.u32 8, %s15
        %s53 = smul.u32 %s15, 64
        loop: start=0, step=1, limit=64
        $region13: #{tpu_custom_call.1} parent=11 // loop_pre_header
          _
        $region14: #{tpu_custom_call.1} parent=11 // loop_header
          %s55 = sphi 0, %s59
          %p56 = scmp.ge.s32.totalorder %s55, 64
        $region15: #{tpu_custom_call.1} parent=11 // loop_header_branch
          %58 = sbr.rel (%p56) target = $region19
        $region16: #{tpu_custom_call.1} parent=11 // loop_body
          %s60 = sadd.s32 %s53, %s55
          %s61 = sld [smem:[#allocation4 + %s60]]
          %p62 = scmp.gt.s32.totalorder %s61, 0
          %s63 = scalar_select %p62, %s61, 0
          %p64 = scmp.lt.s32.totalorder %s63, 511
          %s65 = scalar_select %p64, %s63, 511
          %s66 = smul.addr %s65, 16
          %s67 = scalar_lea.hbm %s1, %s66
          %s68 = scalar_lea.vmem %s51, %s55 [#allocation5]
          // Predicated region
          $region20: #{tpu_custom_call.1} parent=16 // pred_check
            _
          $region21: #{tpu_custom_call.1} parent=16 // pred_check_branch
            %70 = sbr.rel target = $region23
          $region22: #{tpu_custom_call.1} parent=16 // pred_region
            %71 = sst [smem:[#allocation9]] [#allocation8]
            %72 = sst [smem:[#allocation10]] [#allocation7]
          $region23: #{tpu_custom_call.1} parent=16 // pred_fallthru
            _
          %74 = shalt.err (0)
          %s76 = sshll.u32 %s68, 4
          %s77 = int_to_ptr.vmem [resolvable:$true] %s76
          %79 = dma.hbm_to_vmem [thread:$0]  %s67, 16, %s77, [#allocation2]
        $region17: #{tpu_custom_call.1} parent=11 // loop_footer
          %s59 = sadd.s32 1, %s55
        $region18: #{tpu_custom_call.1} parent=11 // loop_footer_branch
          %54 = sbr.rel target = $region14
        $region19: #{tpu_custom_call.1} parent=11 // loop_exit
          _
        loop: start=0, step=1, limit=64
        $region24: #{tpu_custom_call.1} parent=11 // loop_pre_header
          _
        $region25: #{tpu_custom_call.1} parent=11 // loop_header
          %s81 = sphi 0, %s85
          %p82 = scmp.ge.s32.totalorder %s81, 64
        $region26: #{tpu_custom_call.1} parent=11 // loop_header_branch
          %84 = sbr.rel (%p82) target = $region30
        $region27: #{tpu_custom_call.1} parent=11 // loop_body
          %s86 = smul.u32 1, 1
          %s87 = sshll.u32 %s86, 4
          %88 = dma.done [#allocation2], %s87
        $region28: #{tpu_custom_call.1} parent=11 // loop_footer
          %s85 = sadd.s32 1, %s81
        $region29: #{tpu_custom_call.1} parent=11 // loop_footer_branch
          %80 = sbr.rel target = $region25
        $region30: #{tpu_custom_call.1} parent=11 // loop_exit
          _
        %s89 = sand.u32 %s24, 1
        %s90 = scalar_lea.sflag [#allocation6], %s89
        %s91 = sand.u32 %s24, 1
        %s92 = smul.addr %s91, 64
        %s93 = scalar_lea.vmem [#allocation5], %s92
        // Predicated region
        $region31: #{tpu_custom_call.1} parent=11 // pred_check
          %p94 = pneg %p30
        $region32: #{tpu_custom_call.1} parent=11 // pred_check_branch
          %96 = sbr.rel (%p94) target = $region34
        $region33: #{tpu_custom_call.1} parent=11 // pred_region
          %s97 = smul.u32 8, %s15
          %s99 = ssub.s32 1024, 1024
          %100 = vsyncadd %s90, %s99
          %s101 = smul.addr %s97, 128
          %s102 = scalar_lea.hbm %s2, %s101
          %s103 = sshll.u32 %s93, 4
          %s104 = int_to_ptr.vmem [resolvable:$true] %s103
          %109 = dma.vmem_to_hbm [thread:$0]  %s104, 1024, %s102, %s90, 128, 128, 8
        $region34: #{tpu_custom_call.1} parent=11 // pred_fallthru
          _
      $region12: #{tpu_custom_call.1} parent=5 // pred_fallthru
        _
      %p110 = scmp.le.s32.totalorder 1, %s15
      // Predicated region
      $region35: #{tpu_custom_call.1} parent=5 // pred_check
        %p111 = pneg %p110
      $region36: #{tpu_custom_call.1} parent=5 // pred_check_branch
        %113 = sbr.rel (%p111) target = $region38
      $region37: #{tpu_custom_call.1} parent=5 // pred_region
        %s114 = ssub.s32 %s15, 1
        // Predicated region
        $region39: #{tpu_custom_call.1} parent=37 // pred_check
          %p115 = pneg %p36
        $region40: #{tpu_custom_call.1} parent=37 // pred_check_branch
          %117 = sbr.rel (%p115) target = $region42
        $region41: #{tpu_custom_call.1} parent=37 // pred_region
          %s118 = sand.u32 %s27, 1
          %s119 = scalar_lea.sflag [#allocation6], %s118
          %s120 = sand.u32 %s27, 1
          %s121 = smul.addr %s120, 64
          %s122 = scalar_lea.vmem [#allocation5], %s121
          %123 = dma.done %s119, 1024
        $region42: #{tpu_custom_call.1} parent=37 // pred_fallthru
          _
      $region38: #{tpu_custom_call.1} parent=5 // pred_fallthru
        _
    $region6: #{tpu_custom_call.1} parent=1 // loop_footer
      %s19 = sadd.s32 1, %s15
    $region7: #{tpu_custom_call.1} parent=1 // loop_footer_branch
      %14 = sbr.rel target = $region3
    $region8: #{tpu_custom_call.1} parent=1 // loop_exit
      _
    %124 = vsyncpa [#allocation6], 1
    %s125 = scalar_lea.sflag [#allocation6], 1
    %126 = vsyncpa %s125, 1
  %127 = vsyncmov [#allocation2]
  %s128 = vpop.sfrf %127
  %p129 = scmp.eq.s32.totalorder %s128, 0
  %p130 = pneg %p129
  %132 = shalt.err (%p130)

</llo_original>
